<compile_context>
chip_gen: v7x
topology: tpu7x:2x2x1
jax: 0.10.0
libtpu: 0.0.40
codegen_flags: <defaults>
</compile_context>

<pallas_src>
import math
import functools

import jax
import jax.numpy as jnp
from jax.experimental import pallas as pl
from jax.experimental.pallas import tpu as pltpu


def _keep_threshold(p):
    """uint32 threshold t with P(bits < t) == p (drop probability)."""
    return min(int(round(float(p) * (1 << 32))), (1 << 32) - 1)


def _pe_dropout_kernel(x_ref, pe_ref, bits_ref, o_ref, *, keep_threshold,
                       inv_keep, batch):
    """out = dropout(x + pe) on one (tS, B*D) tile."""
    x = x_ref[...].astype(jnp.float32)                 # (tS, B*D)
    pe = pe_ref[...].astype(jnp.float32)               # (tS, D)
    if batch > 1:                                      # broadcast pe over batch
        pe = jnp.concatenate([pe] * batch, axis=-1)    # (tS, B*D)
    y = x + pe
    keep = bits_ref[...] >= jnp.uint32(keep_threshold)       # Bernoulli(1 - p)
    y = jnp.where(keep, y * jnp.float32(inv_keep), 0.0)
    o_ref[...] = y.astype(o_ref.dtype)


def make_pe_buffer(d_model, max_len=5000, dtype=jnp.float32):
    """Same buffer as the PyTorch __init__: shape [max_len, 1, d_model]."""
    position = jnp.arange(0, max_len, dtype=jnp.float32)[:, None]
    div_term = jnp.exp(
        jnp.arange(0, d_model, 2, dtype=jnp.float32)
        * (-math.log(10000.0) / d_model))
    pe = jnp.zeros((max_len, d_model), dtype=jnp.float32)
    pe = pe.at[:, 0::2].set(jnp.sin(position * div_term))
    pe = pe.at[:, 1::2].set(jnp.cos(position * div_term))
    return pe[:, None, :].astype(dtype)                # (max_len, 1, d_model)


def _choose_seq_tile(seq_len, lane_width):
    """Largest multiple-of-8 sequence tile whose double-buffered working set
    (x + bits + out, all 4-byte wide `lane_width`) stays within ~12 MiB of
    VMEM (fits the 32 MiB scoped default on v5e/v6e/v7x)."""
    per_row_bytes = 3 * 2 * 4 * lane_width
    t = (12 * 1024 * 1024) // max(per_row_bytes, 1)
    t = max(8, min(512, (t // 8) * 8))
    return min(seq_len, t)


def positional_encoding_forward(x, pe, *, key=None, p=0.1, train=True):
    """x: [S, B, D]; pe: [max_len, 1, D]. Returns [S, B, D]."""
    S, B, D = x.shape
    p = float(p)
    if not (0.0 <= p < 1.0):
        raise ValueError(f"dropout p must be in [0, 1), got {p}")

    if (not train) or p == 0.0:
        # Dropout is identity: a bare elementwise add fuses better in XLA
        # than paying a Pallas kernel boundary.
        return (x + pe[:S]).astype(x.dtype)

    if key is None:
        raise ValueError("a PRNG key is required when train=True and p > 0")

    BD = B * D
    x2d = x.reshape(S, BD)                                  # free lane-dense view
    pe2d = pe.reshape(pe.shape[0], pe.shape[-1])            # (max_len, D)
    bits = jax.random.bits(key, (S, BD), dtype=jnp.uint32)  # dropout randomness

    tS = _choose_seq_tile(S, BD)
    if tS >= S:
        tS = S
        pe_in = pe2d[:S]        # single tile: block == full dims (any S ok)
    else:
        pe_in = pe2d            # rows picked by index_map, no wrapper pe copy

    kernel = functools.partial(
        _pe_dropout_kernel,
        keep_threshold=_keep_threshold(p),
        inv_keep=1.0 / (1.0 - p),
        batch=B)

    out2d = pl.pallas_call(
        kernel,
        out_shape=jax.ShapeDtypeStruct((S, BD), x.dtype),
        grid=(pl.cdiv(S, tS),),
        in_specs=[
            pl.BlockSpec((tS, BD), lambda i: (i, 0)),   # x tile
            pl.BlockSpec((tS, D), lambda i: (i, 0)),    # pe rows
            pl.BlockSpec((tS, BD), lambda i: (i, 0)),   # dropout bits
        ],
        out_specs=pl.BlockSpec((tS, BD), lambda i: (i, 0)),
        compiler_params=pltpu.CompilerParams(
            dimension_semantics=("parallel",),          # megacore-shardable (v7x)
            vmem_limit_bytes=48 * 1024 * 1024,
        ),
    )(x2d, pe_in, bits)

    return out2d.reshape(S, B, D)


if __name__ == "__main__":
    S, B, D = 8, 2, 32          # seq_len, batch, d_model
    p = 0.1

    key = jax.random.PRNGKey(0)
    x_key, drop_key = jax.random.split(key)
    x = jax.random.normal(x_key, (S, B, D), dtype=jnp.float32)
    pe = make_pe_buffer(D, max_len=64)

    # Training forward: PE add + dropout fused in the Pallas kernel.
    out_train = positional_encoding_forward(x, pe, key=drop_key, p=p, train=True)
    jax.block_until_ready(out_train)
    assert out_train.shape == (S, B, D)

    # Reference for the training path (same bits, same integer threshold).
    bits_ref = jax.random.bits(drop_key, (S, B * D), dtype=jnp.uint32)
    keep_ref = (bits_ref >= jnp.uint32(_keep_threshold(p))).reshape(S, B, D)
    ref_train = jnp.where(keep_ref,
                          (x + pe[:S]) * jnp.float32(1.0 / (1.0 - p)),
                          0.0).astype(x.dtype)
    assert jnp.allclose(out_train, ref_train, atol=1e-6), "train-path mismatch"

    # Eval forward: dropout is identity; Pallas is bypassed (plain XLA add).
    out_eval = positional_encoding_forward(x, pe, p=p, train=False)
    jax.block_until_ready(out_eval)
    assert jnp.allclose(out_eval, x + pe[:S], atol=1e-6), "eval-path mismatch"

    print("KERNEL_OK")
</pallas_src>

<mosaic_0001>
module attributes {stable_mosaic.version = 11 : i64} {
  func.func @_pe_dropout_kernel(%arg0: i32, %arg1: memref<8x64xf32, #tpu.memory_space<vmem>>, %arg2: memref<8x32xf32, #tpu.memory_space<vmem>>, %arg3: memref<8x64xi32, #tpu.memory_space<vmem>>, %arg4: memref<8x64xf32, #tpu.memory_space<vmem>>) attributes {dimension_semantics = [#tpu.dimension_semantics<parallel>], iteration_bounds = array<i64: 1>, scalar_prefetch = 0 : i64, scratch_operands = 0 : i64, tpu.core_type = #tpu.core_type<tc>, window_params = [{transform_indices = @transform_0, window_bounds = array<i64: 8, 64>}, {transform_indices = @transform_1, window_bounds = array<i64: 8, 32>}, {transform_indices = @transform_2, window_bounds = array<i64: 8, 64>}, {transform_indices = @transform_3, window_bounds = array<i64: 8, 64>}]} {
    %c0 = arith.constant 0 : index
    %c0_0 = arith.constant 0 : index
    %0 = vector.load %arg1[%c0, %c0_0] : memref<8x64xf32, #tpu.memory_space<vmem>>, vector<8x64xf32>
    %c0_1 = arith.constant 0 : index
    %c0_2 = arith.constant 0 : index
    %1 = vector.load %arg2[%c0_1, %c0_2] : memref<8x32xf32, #tpu.memory_space<vmem>>, vector<8x32xf32>
    %2 = tpu.concatenate %1, %1 in 1 : vector<8x32xf32>, vector<8x32xf32> -> vector<8x64xf32>
    %3 = arith.addf %0, %2 : vector<8x64xf32>
    %c0_3 = arith.constant 0 : index
    %c0_4 = arith.constant 0 : index
    %4 = vector.load %arg3[%c0_3, %c0_4] : memref<8x64xi32, #tpu.memory_space<vmem>>, vector<8x64xi32>
    %c429496730_i32 = arith.constant 429496730 : i32
    %5 = vector.broadcast %c429496730_i32 : i32 to vector<8x64xi32>
    %6 = arith.cmpi uge, %4, %5 : vector<8x64xi32>
    %cst = arith.constant 1.11111116 : f32
    %7 = vector.broadcast %cst : f32 to vector<8x64xf32>
    %8 = arith.mulf %3, %7 : vector<8x64xf32>
    %cst_5 = arith.constant 0.000000e+00 : f32
    %9 = vector.broadcast %cst_5 : f32 to vector<8x64xf32>
    %10 = arith.select %6, %8, %9 : vector<8x64xi1>, vector<8x64xf32>
    %c0_6 = arith.constant 0 : index
    %c0_7 = arith.constant 0 : index
    %11 = vector.load %arg4[%c0_6, %c0_7] : memref<8x64xf32, #tpu.memory_space<vmem>>, vector<8x64xf32>
    tpu.vector_store %arg4[%c0_6, %c0_7], %10 {strides = array<i32>} : memref<8x64xf32, #tpu.memory_space<vmem>>, vector<8x64xf32>,
    return
  }
  func.func @transform_0(%arg0: i32) -> (i32, i32) {
    %c0_i32 = arith.constant 0 : i32
    %c0_i32_0 = arith.constant 0 : i32
    return %arg0, %c0_i32 : i32, i32
  }
  func.func @transform_1(%arg0: i32) -> (i32, i32) {
    %c0_i32 = arith.constant 0 : i32
    %c0_i32_0 = arith.constant 0 : i32
    return %arg0, %c0_i32 : i32, i32
  }
  func.func @transform_2(%arg0: i32) -> (i32, i32) {
    %c0_i32 = arith.constant 0 : i32
    %c0_i32_0 = arith.constant 0 : i32
    return %arg0, %c0_i32 : i32, i32
  }
  func.func @transform_3(%arg0: i32) -> (i32, i32) {
    %c0_i32 = arith.constant 0 : i32
    %c0_i32_0 = arith.constant 0 : i32
    return %arg0, %c0_i32 : i32, i32
  }
}

</mosaic_0001>

<llo_original>
// kernel: tpu_custom_call.1
$region0: #{tpu_custom_call.1}
  #allocation0 [shape = 'u32[]', space=smem, size = 0x4, offset = 0x4, fixed_abs, tag = 'smem constant byte address 0x4 - core index']
  #allocation1 [shape = 'u32[144,128]{1,0:T(1,128)}', space=vmem, size = 0x12000, scoped, tag = 'internal scratch']
  %s0 = inlined_call_operand.hbm [shape: f32[8,64], index: 0, kind: input, shape index: {}]
  %s1 = inlined_call_operand.hbm [shape: f32[8,32], index: 1, kind: input, shape index: {}]
  %s2 = inlined_call_operand.hbm [shape: u32[8,64], index: 2, kind: input, shape index: {}]
  %s3 = inlined_call_operand.hbm [shape: f32[8,64], index: 3, kind: output, shape index: {}]
  %s4 = sld [smem:[#allocation0]]
  $region34: #{tpu_custom_call.1} parent=0
    _
  %s6 = ssub.s32 1, %s4
  %s7 = scalar_select 0, %s6, %s4
  $region1: #{tpu_custom_call.1} parent=0
    #allocation2 [shape = 'u8[4096]{0}', space=vmem, size = 0x1000, scoped, tag = 'input window, operand 0, single buffered']
    #allocation3 [shape = 's32[1]{0}', space=sflag, size = 0x4, scoped, tag = 'scoped memory for tpu_custom_call.1']
    #allocation4 [shape = 's32[1]{0}', space=sflag, size = 0x4, scoped, tag = 'scoped memory for tpu_custom_call.1']
    #allocation5 [shape = 'u8[4096]{0}', space=vmem, size = 0x1000, scoped, tag = 'input window, operand 1, single buffered']
    #allocation6 [shape = 's32[1]{0}', space=sflag, size = 0x4, scoped, tag = 'scoped memory for tpu_custom_call.1']
    #allocation7 [shape = 'u8[4096]{0}', space=vmem, size = 0x1000, scoped, tag = 'input window, operand 2, single buffered']
    #allocation8 [shape = 'u8[4096]{0}', space=vmem, size = 0x1000, scoped, tag = 'output window, operand 0, single buffered']
    %8 = vsyncpa [#allocation3], 0
    %9 = vsyncpa [#allocation6], 0
    %10 = vsyncpa [#allocation4], 0
    // Predicated region
    $region2: #{tpu_custom_call.1} parent=1 // pred_check
      _
    $region3: #{tpu_custom_call.1} parent=1 // pred_check_branch
      %12 = sbr.rel (0) target = $region5
    $region4: #{tpu_custom_call.1} parent=1 // pred_region
      %s14 = ssub.s32 128, 128
      %15 = vsyncadd [#allocation3], %s14
      %s17 = sshll.u32 [#allocation2], 4
      %s18 = int_to_ptr.vmem [resolvable:$true] %s17
      %20 = dma.hbm_to_vmem [thread:$0]  %s0, 128, %s18, [#allocation3]
    $region5: #{tpu_custom_call.1} parent=1 // pred_fallthru
      _
    // Predicated region
    $region6: #{tpu_custom_call.1} parent=1 // pred_check
      _
    $region7: #{tpu_custom_call.1} parent=1 // pred_check_branch
      %22 = sbr.rel (0) target = $region9
    $region8: #{tpu_custom_call.1} parent=1 // pred_region
      %s24 = ssub.s32 128, 128
      %25 = vsyncadd [#allocation6], %s24
      %s27 = sshll.u32 [#allocation5], 4
      %s28 = int_to_ptr.vmem [resolvable:$true] %s27
      %30 = dma.hbm_to_vmem [thread:$0]  %s1, 128, %s28, [#allocation6]
    $region9: #{tpu_custom_call.1} parent=1 // pred_fallthru
      _
    // Predicated region
    $region10: #{tpu_custom_call.1} parent=1 // pred_check
      _
    $region11: #{tpu_custom_call.1} parent=1 // pred_check_branch
      %32 = sbr.rel (0) target = $region13
    $region12: #{tpu_custom_call.1} parent=1 // pred_region
      %s34 = ssub.s32 128, 128
      %35 = vsyncadd [#allocation6], %s34
      %s37 = sshll.u32 [#allocation7], 4
      %s38 = int_to_ptr.vmem [resolvable:$true] %s37
      %40 = dma.hbm_to_vmem [thread:$0]  %s2, 128, %s38, [#allocation6]
    $region13: #{tpu_custom_call.1} parent=1 // pred_fallthru
      _
    // Predicated region
    $region14: #{tpu_custom_call.1} parent=1 // pred_check
      _
    $region15: #{tpu_custom_call.1} parent=1 // pred_check_branch
      %42 = sbr.rel (0) target = $region17
    $region16: #{tpu_custom_call.1} parent=1 // pred_region
      %43 = dma.done [#allocation3], 128
    $region17: #{tpu_custom_call.1} parent=1 // pred_fallthru
      _
    // Predicated region
    $region18: #{tpu_custom_call.1} parent=1 // pred_check
      _
    $region19: #{tpu_custom_call.1} parent=1 // pred_check_branch
      %45 = sbr.rel (0) target = $region21
    $region20: #{tpu_custom_call.1} parent=1 // pred_region
      %46 = dma.done [#allocation6], 128
    $region21: #{tpu_custom_call.1} parent=1 // pred_fallthru
      _
    // Predicated region
    $region22: #{tpu_custom_call.1} parent=1 // pred_check
      _
    $region23: #{tpu_custom_call.1} parent=1 // pred_check_branch
      %48 = sbr.rel (0) target = $region25
    $region24: #{tpu_custom_call.1} parent=1 // pred_region
      %49 = dma.done [#allocation6], 128
    $region25: #{tpu_custom_call.1} parent=1 // pred_fallthru
      _
    %v50 = vld [vmem:[#allocation2] sm:$0xff]
    %v51 = vld [vmem:[#allocation5] sm:$0xff]
    %53 = vrot.lane.b32.xlu0 %v51, 32
    %v54 = vpop.permute.xlu0 %53
    %vm56 = vcmask 261120
    %v57 = vsel %vm56, %v51, %v54
    %v58 = vadd.f32 %v50, %v57
    %v59 = vld [vmem:[#allocation7] sm:$0xff]
    %vm60 = vcmp.ge.u32.totalorder %v59, 429496730
    %v61 = vmul.f32 %v58, 1.1111112
    %v62 = vsel %vm60, %v61, 0.0
    %vm63 = vcmask 523264
    %64 = vst.msk [vmem:[#allocation8] sm:$0xff] %vm63, %v62
    // Predicated region
    $region26: #{tpu_custom_call.1} parent=1 // pred_check
      _
    $region27: #{tpu_custom_call.1} parent=1 // pred_check_branch
      %66 = sbr.rel (0) target = $region29
    $region28: #{tpu_custom_call.1} parent=1 // pred_region
      %s68 = ssub.s32 128, 128
      %69 = vsyncadd [#allocation4], %s68
      %s71 = sshll.u32 [#allocation8], 4
      %s72 = int_to_ptr.vmem [resolvable:$true] %s71
      %74 = dma.vmem_to_hbm [thread:$0]  %s72, 128, %s3, [#allocation4]
    $region29: #{tpu_custom_call.1} parent=1 // pred_fallthru
      _
    // Predicated region
    $region30: #{tpu_custom_call.1} parent=1 // pred_check
      _
    $region31: #{tpu_custom_call.1} parent=1 // pred_check_branch
      %76 = sbr.rel (0) target = $region33
    $region32: #{tpu_custom_call.1} parent=1 // pred_region
      %77 = dma.done [#allocation4], 128
    $region33: #{tpu_custom_call.1} parent=1 // pred_fallthru
      _
    %78 = vsyncpa [#allocation3], 1
    %79 = vsyncpa [#allocation6], 1
    %80 = vsyncpa [#allocation4], 1

</llo_original>
